<compile_context>
chip_gen: v5e
topology: v5e:2x2
jax: 0.10.0
libtpu: 0.0.40
codegen_flags: <defaults>
</compile_context>

<pallas_src>
import jax
import jax.numpy as jnp
from jax import lax
from jax.experimental import pallas as pl
from jax.experimental.pallas import tpu as pltpu

LANES = 128
MAX_BLOCK_BYTES = 4 * 1024 * 1024     # ~4 MiB per input per pipeline buffer
VMEM_LIMIT_BYTES = 32 * 1024 * 1024   # safe headroom on v5e/v6e (128 MiB) and v7x (64 MiB)


def _round_up(x, m):
    return (x + m - 1) // m * m


def _sublane_multiple(dtype):
    # (8,128) tile for 4-byte dtypes, (16,128) for 2-byte, (32,128) for 1-byte.
    return max(8, 32 // jnp.dtype(dtype).itemsize)


def _num_tensorcores():
    """2 on dual-TensorCore chips (v7x), 1 otherwise (v5e/v6e)."""
    try:
        kind = jax.devices()[0].device_kind.lower()
    except Exception:
        return 1
    return 2 if ("v7" in kind or "tpu7" in kind) else 1


def _make_smooth_l1_kernel(n, block_rows, blocks_per_part):
    block_elems = block_rows * LANES

    def kernel(x_ref, y_ref, o_ref):
        p = pl.program_id(0)           # parallel (core) axis
        i = pl.program_id(1)           # reduction axis over row blocks

        @pl.when(i == 0)
        def _init():
            o_ref[...] = jnp.zeros_like(o_ref)

        logical_block = p * blocks_per_part + i
        block_start = logical_block * block_elems

        # Upcast inside the kernel (free VPU op; keeps HBM traffic narrow for
        # sub-32-bit inputs).
        x = x_ref[...].astype(jnp.float32)
        y = y_ref[...].astype(jnp.float32)
        diff = x - y
        absd = jnp.abs(diff)
        # SmoothL1 (beta = 1): 0.5*d^2 if |d| < 1 else |d| - 0.5
        elem = jnp.where(absd < 1.0, 0.5 * diff * diff, absd - 0.5)

        # Fast path: block fully inside the valid range -> no per-element mask.
        @pl.when(block_start + block_elems <= n)
        def _full_block():
            o_ref[...] += elem.reshape(-1, 8, LANES).sum(axis=0)

        # Straddle path: only the single block containing the boundary pays for
        # the iota/mask.  Blocks entirely past the end contribute nothing.
        @pl.when(jnp.logical_and(block_start < n,
                                 block_start + block_elems > n))
        def _tail_block():
            row = lax.broadcasted_iota(jnp.int32, (block_rows, LANES), 0)
            col = lax.broadcasted_iota(jnp.int32, (block_rows, LANES), 1)
            local_idx = row * LANES + col
            valid = local_idx < (n - block_start)
            masked = jnp.where(valid, elem, 0.0)
            o_ref[...] += masked.reshape(-1, 8, LANES).sum(axis=0)

    return kernel


def huber_loss(logits, labels):
    assert logits.shape == labels.shape
    x = logits.reshape(-1)
    y = labels.reshape(-1)
    n = x.shape[0]
    dtype = x.dtype

    sub = _sublane_multiple(dtype)
    chunk = sub * LANES
    # Align the flat length to the dtype's (sub, 128) packing tile.  For aligned
    # inputs this is a zero-copy reshape; otherwise only a tiny tail pad whose
    # contents are masked in-kernel.
    rem = (-n) % chunk
    if rem:
        x = jnp.pad(x, (0, rem))
        y = jnp.pad(y, (0, rem))
    m_rows = (n + rem) // LANES
    x = x.reshape(m_rows, LANES)
    y = y.reshape(m_rows, LANES)

    # Dtype-aware tile: ~4 MiB per input per buffer, rounded to the sublane multiple.
    itemsize = jnp.dtype(dtype).itemsize
    max_rows = max(sub, (MAX_BLOCK_BYTES // (LANES * itemsize)) // sub * sub)
    block_rows = min(max_rows, m_rows)
    num_blocks = pl.cdiv(m_rows, block_rows)

    # 2-way partial split only on dual-TC chips, and only if there is enough work.
    num_partials = min(_num_tensorcores(), num_blocks)
    blocks_per_part = pl.cdiv(num_blocks, num_partials)
    max_block = num_blocks - 1

    def in_index_map(p, i):
        # Clamp so logically out-of-range blocks (odd block counts across the
        # partial split) still DMA a valid block; the kernel adds nothing for them.
        return (jnp.minimum(p * blocks_per_part + i, max_block), 0)

    kernel = _make_smooth_l1_kernel(n, block_rows, blocks_per_part)

    partials = pl.pallas_call(
        kernel,
        out_shape=jax.ShapeDtypeStruct((num_partials, 8, LANES), jnp.float32),
        grid=(num_partials, blocks_per_part),
        in_specs=[
            pl.BlockSpec((block_rows, LANES), in_index_map),
            pl.BlockSpec((block_rows, LANES), in_index_map),
        ],
        # Output block is (8, 128)-tiled and VMEM-resident across the reduction
        # axis (acts as the accumulator); the leading dim is squeezed per partial.
        out_specs=pl.BlockSpec((None, 8, LANES), lambda p, i: (p, 0, 0)),
        compiler_params=pltpu.CompilerParams(
            dimension_semantics=("parallel", "arbitrary"),
            vmem_limit_bytes=VMEM_LIMIT_BYTES,
        ),
    )(x, y)

    # n is static: bake 1/n instead of a runtime divide inside the kernel.
    return jnp.sum(partials) * (1.0 / n)


if __name__ == "__main__":
    key = jax.random.PRNGKey(0)
    k1, k2 = jax.random.split(key)
    shape = (2, 4, 16, 16)
    logits = jax.random.normal(k1, shape, dtype=jnp.float32)
    labels = jax.random.normal(k2, shape, dtype=jnp.float32)

    loss = huber_loss(logits, labels)
    jax.block_until_ready(loss)

    # Pure-JAX reference (SmoothL1, beta=1, mean reduction).
    diff = logits - labels
    absd = jnp.abs(diff)
    ref = jnp.mean(jnp.where(absd < 1.0, 0.5 * diff * diff, absd - 0.5))
    assert jnp.allclose(loss, ref, rtol=1e-5, atol=1e-6), (loss, ref)

    print("KERNEL_OK")
</pallas_src>

<mosaic_0001>
module attributes {stable_mosaic.version = 11 : i64} {
  func.func @kernel(%arg0: i32, %arg1: i32, %arg2: memref<16x128xf32, #tpu.memory_space<vmem>>, %arg3: memref<16x128xf32, #tpu.memory_space<vmem>>, %arg4: memref<1x8x128xf32, #tpu.memory_space<vmem>>) attributes {dimension_semantics = [#tpu.dimension_semantics<parallel>, #tpu.dimension_semantics<arbitrary>], iteration_bounds = array<i64: 1, 1>, scalar_prefetch = 0 : i64, scratch_operands = 0 : i64, tpu.core_type = #tpu.core_type<tc>, window_params = [{transform_indices = @transform_0, window_bounds = array<i64: 16, 128>}, {transform_indices = @transform_1, window_bounds = array<i64: 16, 128>}, {transform_indices = @transform_2, window_bounds = array<i64: 1, 8, 128>}]} {
    %c0_i32 = arith.constant 0 : i32
    %0 = arith.cmpi eq, %arg1, %c0_i32 : i32
    %1 = arith.extui %0 : i1 to i32
    %c0_i32_0 = arith.constant 0 : i32
    %2 = arith.cmpi ne, %1, %c0_i32_0 : i32
    scf.if %2 {
      %cst_13 = arith.constant 0.000000e+00 : f32
      %28 = vector.broadcast %cst_13 : f32 to vector<8x128xf32>
      %c0_14 = arith.constant 0 : index
      %c0_15 = arith.constant 0 : index
      %c0_16 = arith.constant 0 : index
      %29 = vector.load %arg4[%c0_14, %c0_15, %c0_16] : memref<1x8x128xf32, #tpu.memory_space<vmem>>, vector<1x8x128xf32>
      %30 = vector.shape_cast %29 : vector<1x8x128xf32> to vector<8x128xf32>
      %31 = vector.shape_cast %28 : vector<8x128xf32> to vector<1x8x128xf32>
      tpu.vector_store %arg4[%c0_14, %c0_15, %c0_16], %31 {strides = array<i32>} : memref<1x8x128xf32, #tpu.memory_space<vmem>>, vector<1x8x128xf32>,
    } else {
    }
    %c1_i32 = arith.constant 1 : i32
    %3 = arith.muli %arg0, %c1_i32 : i32
    %4 = arith.addi %3, %arg1 : i32
    %c2048_i32 = arith.constant 2048 : i32
    %5 = arith.muli %4, %c2048_i32 : i32
    %c0 = arith.constant 0 : index
    %c0_1 = arith.constant 0 : index
    %6 = vector.load %arg2[%c0, %c0_1] : memref<16x128xf32, #tpu.memory_space<vmem>>, vector<16x128xf32>
    %c0_2 = arith.constant 0 : index
    %c0_3 = arith.constant 0 : index
    %7 = vector.load %arg3[%c0_2, %c0_3] : memref<16x128xf32, #tpu.memory_space<vmem>>, vector<16x128xf32>
    %8 = arith.subf %6, %7 : vector<16x128xf32>
    %9 = math.absf %8 : vector<16x128xf32>
    %cst = arith.constant 1.000000e+00 : f32
    %10 = vector.broadcast %cst : f32 to vector<16x128xf32>
    %11 = arith.cmpf olt, %9, %10 : vector<16x128xf32>
    %cst_4 = arith.constant 5.000000e-01 : f32
    %12 = vector.broadcast %cst_4 : f32 to vector<16x128xf32>
    %13 = arith.mulf %12, %8 : vector<16x128xf32>
    %14 = arith.mulf %13, %8 : vector<16x128xf32>
    %cst_5 = arith.constant 5.000000e-01 : f32
    %15 = vector.broadcast %cst_5 : f32 to vector<16x128xf32>
    %16 = arith.subf %9, %15 : vector<16x128xf32>
    %17 = arith.select %11, %14, %16 : vector<16x128xi1>, vector<16x128xf32>
    %c2048_i32_6 = arith.constant 2048 : i32
    %18 = arith.addi %5, %c2048_i32_6 : i32
    %c2048_i32_7 = arith.constant 2048 : i32
    %19 = arith.cmpi sle, %18, %c2048_i32_7 : i32
    %20 = arith.extui %19 : i1 to i32
    %c0_i32_8 = arith.constant 0 : i32
    %21 = arith.cmpi ne, %20, %c0_i32_8 : i32
    scf.if %21 {
      %c0_13 = arith.constant 0 : index
      %c0_14 = arith.constant 0 : index
      %c0_15 = arith.constant 0 : index
      %28 = vector.load %arg4[%c0_13, %c0_14, %c0_15] : memref<1x8x128xf32, #tpu.memory_space<vmem>>, vector<1x8x128xf32>
      %29 = vector.shape_cast %28 : vector<1x8x128xf32> to vector<8x128xf32>
      %30 = vector.shape_cast %17 : vector<16x128xf32> to vector<2x8x128xf32>
      %cst_16 = arith.constant dense<0.000000e+00> : vector<8x128xf32>
      %31 = vector.multi_reduction <add>, %30, %cst_16 [0] : vector<2x8x128xf32> to vector<8x128xf32>
      %32 = arith.addf %29, %31 : vector<8x128xf32>
      %c0_17 = arith.constant 0 : index
      %c0_18 = arith.constant 0 : index
      %c0_19 = arith.constant 0 : index
      %33 = vector.load %arg4[%c0_17, %c0_18, %c0_19] : memref<1x8x128xf32, #tpu.memory_space<vmem>>, vector<1x8x128xf32>
      %34 = vector.shape_cast %33 : vector<1x8x128xf32> to vector<8x128xf32>
      %35 = vector.shape_cast %32 : vector<8x128xf32> to vector<1x8x128xf32>
      tpu.vector_store %arg4[%c0_17, %c0_18, %c0_19], %35 {strides = array<i32>} : memref<1x8x128xf32, #tpu.memory_space<vmem>>, vector<1x8x128xf32>,
    } else {
    }
    %c2048_i32_9 = arith.constant 2048 : i32
    %22 = arith.cmpi slt, %5, %c2048_i32_9 : i32
    %c2048_i32_10 = arith.constant 2048 : i32
    %23 = arith.addi %5, %c2048_i32_10 : i32
    %c2048_i32_11 = arith.constant 2048 : i32
    %24 = arith.cmpi sgt, %23, %c2048_i32_11 : i32
    %25 = arith.andi %22, %24 : i1
    %26 = arith.extui %25 : i1 to i32
    %c0_i32_12 = arith.constant 0 : i32
    %27 = arith.cmpi ne, %26, %c0_i32_12 : i32
    scf.if %27 {
      %28 = tpu.iota {dimensions = array<i32: 0>} : vector<16x128xi32>
      %29 = tpu.iota {dimensions = array<i32: 1>} : vector<16x128xi32>
      %c128_i32 = arith.constant 128 : i32
      %30 = vector.broadcast %c128_i32 : i32 to vector<16x128xi32>
      %31 = arith.muli %28, %30 : vector<16x128xi32>
      %32 = arith.addi %31, %29 : vector<16x128xi32>
      %c2048_i32_13 = arith.constant 2048 : i32
      %33 = arith.subi %c2048_i32_13, %5 : i32
      %34 = vector.broadcast %33 : i32 to vector<16x128xi32>
      %35 = arith.cmpi slt, %32, %34 : vector<16x128xi32>
      %cst_14 = arith.constant 0.000000e+00 : f32
      %36 = vector.broadcast %cst_14 : f32 to vector<16x128xf32>
      %37 = arith.select %35, %17, %36 : vector<16x128xi1>, vector<16x128xf32>
      %c0_15 = arith.constant 0 : index
      %c0_16 = arith.constant 0 : index
      %c0_17 = arith.constant 0 : index
      %38 = vector.load %arg4[%c0_15, %c0_16, %c0_17] : memref<1x8x128xf32, #tpu.memory_space<vmem>>, vector<1x8x128xf32>
      %39 = vector.shape_cast %38 : vector<1x8x128xf32> to vector<8x128xf32>
      %40 = vector.shape_cast %37 : vector<16x128xf32> to vector<2x8x128xf32>
      %cst_18 = arith.constant dense<0.000000e+00> : vector<8x128xf32>
      %41 = vector.multi_reduction <add>, %40, %cst_18 [0] : vector<2x8x128xf32> to vector<8x128xf32>
      %42 = arith.addf %39, %41 : vector<8x128xf32>
      %c0_19 = arith.constant 0 : index
      %c0_20 = arith.constant 0 : index
      %c0_21 = arith.constant 0 : index
      %43 = vector.load %arg4[%c0_19, %c0_20, %c0_21] : memref<1x8x128xf32, #tpu.memory_space<vmem>>, vector<1x8x128xf32>
      %44 = vector.shape_cast %43 : vector<1x8x128xf32> to vector<8x128xf32>
      %45 = vector.shape_cast %42 : vector<8x128xf32> to vector<1x8x128xf32>
      tpu.vector_store %arg4[%c0_19, %c0_20, %c0_21], %45 {strides = array<i32>} : memref<1x8x128xf32, #tpu.memory_space<vmem>>, vector<1x8x128xf32>,
    } else {
    }
    return
  }
  func.func @transform_0(%arg0: i32, %arg1: i32) -> (i32, i32) {
    %c1_i32 = arith.constant 1 : i32
    %0 = arith.muli %arg0, %c1_i32 : i32
    %1 = arith.addi %0, %arg1 : i32
    %c0_i32 = arith.constant 0 : i32
    %2 = arith.minsi %1, %c0_i32 : i32
    %c0_i32_0 = arith.constant 0 : i32
    %c0_i32_1 = arith.constant 0 : i32
    return %2, %c0_i32_0 : i32, i32
  }
  func.func @transform_1(%arg0: i32, %arg1: i32) -> (i32, i32) {
    %c1_i32 = arith.constant 1 : i32
    %0 = arith.muli %arg0, %c1_i32 : i32
    %1 = arith.addi %0, %arg1 : i32
    %c0_i32 = arith.constant 0 : i32
    %2 = arith.minsi %1, %c0_i32 : i32
    %c0_i32_0 = arith.constant 0 : i32
    %c0_i32_1 = arith.constant 0 : i32
    return %2, %c0_i32_0 : i32, i32
  }
  func.func @transform_2(%arg0: i32, %arg1: i32) -> (i32, i32, i32) {
    %c0_i32 = arith.constant 0 : i32
    %c0_i32_0 = arith.constant 0 : i32
    %c0_i32_1 = arith.constant 0 : i32
    return %arg0, %c0_i32, %c0_i32_0 : i32, i32, i32
  }
}

</mosaic_0001>

<llo_original>
// kernel: tpu_custom_call.1
$region0: #{tpu_custom_call.1}
  #allocation0 [shape = 'u32[]', space=smem, size = 0x4, offset = 0x4, fixed_abs, tag = 'smem constant byte address 0x4 - core index']
  #allocation1 [shape = 'u32[72,128]{1,0:T(1,128)}', space=vmem, size = 0x9000, scoped, tag = 'internal scratch']
  %s0 = inlined_call_operand.hbm [shape: f32[16,128], index: 0, kind: input, shape index: {}]
  %s1 = inlined_call_operand.hbm [shape: f32[16,128], index: 1, kind: input, shape index: {}]
  %s2 = inlined_call_operand.hbm [shape: f32[1,8,128], index: 2, kind: output, shape index: {}]
  %s3 = sld [smem:[#allocation0]]
  $region38: #{tpu_custom_call.1} parent=0
    _
  %s5 = ssub.s32 1, %s3
  %s6 = scalar_select 0, %s5, %s3
  $region1: #{tpu_custom_call.1} parent=0
    #allocation2 [shape = 'u8[8192]{0}', space=vmem, size = 0x2000, scoped, tag = 'input window, operand 0, single buffered']
    #allocation3 [shape = 's32[1]{0}', space=sflag, size = 0x4, scoped, tag = 'scoped memory for tpu_custom_call.1']
    #allocation4 [shape = 's32[1]{0}', space=sflag, size = 0x4, scoped, tag = 'scoped memory for tpu_custom_call.1']
    #allocation5 [shape = 'u8[8192]{0}', space=vmem, size = 0x2000, scoped, tag = 'input window, operand 1, single buffered']
    #allocation6 [shape = 's32[1]{0}', space=sflag, size = 0x4, scoped, tag = 'scoped memory for tpu_custom_call.1']
    #allocation7 [shape = 'u8[4096]{0}', space=vmem, size = 0x1000, scoped, tag = 'output window, operand 0, single buffered']
    %7 = vsyncpa [#allocation3], 0
    %8 = vsyncpa [#allocation6], 0
    %9 = vsyncpa [#allocation4], 0
    // Predicated region
    $region2: #{tpu_custom_call.1} parent=1 // pred_check
      _
    $region3: #{tpu_custom_call.1} parent=1 // pred_check_branch
      %11 = sbr.rel (0) target = $region5
    $region4: #{tpu_custom_call.1} parent=1 // pred_region
      %s12 = sadd.s32 0, 0
      %p13 = scmp.lt.s32.totalorder %s12, 0
      %s14 = scalar_select %p13, %s12, 0
      %s15 = smul.u32 2, %s14
      %17 = vsyncadd [#allocation3], 0
      %s18 = smul.addr %s15, 8
      %s19 = scalar_lea.hbm %s0, %s18
      %s20 = sshll.u32 %s19, 4
      %s21 = int_to_ptr.hbm [resolvable:$true] %s20
      %s22 = sshll.u32 [#allocation2], 4
      %s23 = int_to_ptr.vmem [resolvable:$true] %s22
      %28 = dma.hbm_to_vmem [thread:$0]  %s21, 256, %s23, [#allocation3], 128, 128, 8
    $region5: #{tpu_custom_call.1} parent=1 // pred_fallthru
      _
    // Predicated region
    $region6: #{tpu_custom_call.1} parent=1 // pred_check
      _
    $region7: #{tpu_custom_call.1} parent=1 // pred_check_branch
      %30 = sbr.rel (0) target = $region9
    $region8: #{tpu_custom_call.1} parent=1 // pred_region
      %s31 = sadd.s32 0, 0
      %p32 = scmp.lt.s32.totalorder %s31, 0
      %s33 = scalar_select %p32, %s31, 0
      %s34 = smul.u32 2, %s33
      %36 = vsyncadd [#allocation6], 0
      %s37 = smul.addr %s34, 8
      %s38 = scalar_lea.hbm %s1, %s37
      %s39 = sshll.u32 %s38, 4
      %s40 = int_to_ptr.hbm [resolvable:$true] %s39
      %s41 = sshll.u32 [#allocation5], 4
      %s42 = int_to_ptr.vmem [resolvable:$true] %s41
      %47 = dma.hbm_to_vmem [thread:$0]  %s40, 256, %s42, [#allocation6], 128, 128, 8
    $region9: #{tpu_custom_call.1} parent=1 // pred_fallthru
      _
    // Predicated region
    $region10: #{tpu_custom_call.1} parent=1 // pred_check
      _
    $region11: #{tpu_custom_call.1} parent=1 // pred_check_branch
      %49 = sbr.rel (0) target = $region13
    $region12: #{tpu_custom_call.1} parent=1 // pred_region
      %51 = dma.done [#allocation3], 256
    $region13: #{tpu_custom_call.1} parent=1 // pred_fallthru
      _
    // Predicated region
    $region14: #{tpu_custom_call.1} parent=1 // pred_check
      _
    $region15: #{tpu_custom_call.1} parent=1 // pred_check_branch
      %53 = sbr.rel (0) target = $region17
    $region16: #{tpu_custom_call.1} parent=1 // pred_region
      %55 = dma.done [#allocation6], 256
    $region17: #{tpu_custom_call.1} parent=1 // pred_fallthru
      _
    %s56 = sadd.s32 0, 0
    %p57 = scmp.lt.s32.totalorder %s56, 0
    %s58 = scalar_select %p57, %s56, 0
    %s59 = smul.u32 2, %s58
    %s60 = sadd.s32 0, 0
    %p61 = scmp.lt.s32.totalorder %s60, 0
    %s62 = scalar_select %p61, %s60, 0
    %s63 = smul.u32 2, %s62
    %p64 = scmp.eq.s32.totalorder 0, 0
    // Predicated region
    $region18: #{tpu_custom_call.1} parent=1 // pred_check
      %p65 = pneg %p64
    $region19: #{tpu_custom_call.1} parent=1 // pred_check_branch
      %67 = sbr.rel (%p65) target = $region21
    $region20: #{tpu_custom_call.1} parent=1 // pred_region
      %68 = vst [vmem:[#allocation7] sm:$0xff] 0.0
    $region21: #{tpu_custom_call.1} parent=1 // pred_fallthru
      _
    %s69 = sadd.s32 0, 0
    %s70 = smul.u32 %s69, 2048
    %v71 = vld [vmem:[#allocation2] sm:$0xff]
    %v72 = vld [vmem:[#allocation2 + $0x8] sm:$0xff]
    %v73 = vld [vmem:[#allocation5] sm:$0xff]
    %v74 = vld [vmem:[#allocation5 + $0x8] sm:$0xff]
    %v75 = vsub.f32 %v71, %v73
    %v76 = vsub.f32 %v72, %v74
    %v77 = vand.u32 2147483647, %v75
    %v78 = vand.u32 2147483647, %v76
    %vm79 = vcmp.lt.f32.partialorder %v77, 1.0
    %vm80 = vcmp.lt.f32.partialorder %v78, 1.0
    %v81 = vmul.f32 %v75, 0.5
    %v82 = vmul.f32 %v76, 0.5
    %v83 = vmul.f32 %v81, %v75
    %v84 = vmul.f32 %v82, %v76
    %v85 = vsub.f32 %v77, 0.5
    %v86 = vsub.f32 %v78, 0.5
    %v87 = vsel %vm79, %v83, %v85
    %v88 = vsel %vm80, %v84, %v86
    %s89 = sadd.s32 %s70, 2048
    %p90 = scmp.le.s32.totalorder %s89, 2048
    // Predicated region
    $region22: #{tpu_custom_call.1} parent=1 // pred_check
      %p91 = pneg %p90
    $region23: #{tpu_custom_call.1} parent=1 // pred_check_branch
      %93 = sbr.rel (%p91) target = $region25
    $region24: #{tpu_custom_call.1} parent=1 // pred_region
      %v94 = vld [vmem:[#allocation7] sm:$0xff]
      %v95 = vadd.f32 %v87, %v88
      %v96 = vadd.f32 %v94, %v95
      %97 = vst [vmem:[#allocation7] sm:$0xff] %v96
    $region25: #{tpu_custom_call.1} parent=1 // pred_fallthru
      _
    %p98 = scmp.lt.s32.totalorder %s70, 2048
    %p99 = scmp.gt.s32.totalorder %s89, 2048
    %p100 = pnand %p98, %p99
    %p101 = pneg %p100
    // Predicated region
    $region26: #{tpu_custom_call.1} parent=1 // pred_check
      _
    $region27: #{tpu_custom_call.1} parent=1 // pred_check_branch
      %103 = sbr.rel (%p100) target = $region29
    $region28: #{tpu_custom_call.1} parent=1 // pred_region
      %v104 = vlaneseq
      %v105 = vshrl.u32 %v104, 7
      %v106 = vadd.s32 %v105, 8
      %v107 = vlaneseq
      %v108 = vand.u32 %v107, 127
      %v109 = vmul.u32 %v105, 128
      %v110 = vmul.u32 %v106, 128
      %v111 = vadd.s32 %v109, %v108
      %v112 = vadd.s32 %v110, %v108
      %s113 = ssub.s32 2048, %s70
      %v114 = vstv %s113
      %vm115 = vcmp.lt.s32.totalorder %v111, %v114
      %vm116 = vcmp.lt.s32.totalorder %v112, %v114
      %v117 = vsel %vm115, %v87, 0.0
      %v118 = vsel %vm116, %v88, 0.0
      %v119 = vld [vmem:[#allocation7] sm:$0xff]
      %v120 = vadd.f32 %v117, %v118
      %v121 = vadd.f32 %v119, %v120
      %122 = vst [vmem:[#allocation7] sm:$0xff] %v121
    $region29: #{tpu_custom_call.1} parent=1 // pred_fallthru
      _
    // Predicated region
    $region30: #{tpu_custom_call.1} parent=1 // pred_check
      _
    $region31: #{tpu_custom_call.1} parent=1 // pred_check_branch
      %124 = sbr.rel (0) target = $region33
    $region32: #{tpu_custom_call.1} parent=1 // pred_region
      %126 = vsyncadd [#allocation4], 0
      %s128 = sshll.u32 [#allocation7], 4
      %s129 = int_to_ptr.vmem [resolvable:$true] %s128
      %s130 = sshll.u32 %s2, 4
      %s131 = int_to_ptr.hbm [resolvable:$true] %s130
      %133 = dma.vmem_to_hbm [thread:$0]  %s129, 128, %s131, [#allocation4]
    $region33: #{tpu_custom_call.1} parent=1 // pred_fallthru
      _
    // Predicated region
    $region34: #{tpu_custom_call.1} parent=1 // pred_check
      _
    $region35: #{tpu_custom_call.1} parent=1 // pred_check_branch
      %135 = sbr.rel (0) target = $region37
    $region36: #{tpu_custom_call.1} parent=1 // pred_region
      %137 = dma.done [#allocation4], 128
    $region37: #{tpu_custom_call.1} parent=1 // pred_fallthru
      _
    %138 = vsyncpa [#allocation3], 1
    %139 = vsyncpa [#allocation6], 1
    %140 = vsyncpa [#allocation4], 1

</llo_original>
